<compile_context>
chip_gen: v6e
topology: v6e:2x2x1
jax: 0.10.0
libtpu: 0.0.40
codegen_flags: <defaults>
</compile_context>

<pallas_src>
import numpy as np
import jax
import jax.numpy as jnp
from jax.experimental import pallas as pl
from jax.experimental.pallas import tpu as pltpu

_LANES = 128
# Target bytes for one INPUT block.  Resident VMEM ~= 2 (double-buffer) x
# (input + output) x block ~= 4x this (~24 MiB): safe on v7x's 64 MiB VMEM.
_TARGET_BLOCK_BYTES = 6 * 1024 * 1024
# Explicit scoped-VMEM limit (overrides v5e's 16 MiB default, headroom on v7x).
_VMEM_LIMIT_BYTES = 40 * 1024 * 1024

# Module's fixed rgb->yuv matrix (out_channel, in_channel).
_RGB_TO_YUV = (
    (+0.299, +0.587, +0.114),
    (-0.147, +0.289, +0.436),
    (+0.615, -0.515, -0.100),
)


def _sublane_mult(dtype) -> int:
    # Native sublane tile height: 8 for 4-byte, 16 for 2-byte, 32 for 1-byte dtypes.
    return max(8, 32 // jnp.dtype(dtype).itemsize)


def _round_up(x: int, m: int) -> int:
    return (x + m - 1) // m * m


def _make_mix_kernel(w_rows):
    (w00, w01, w02), (w10, w11, w12), (w20, w21, w22) = w_rows

    def kernel(x_ref, o_ref):
        # x_ref / o_ref: VMEM (B_tile, 3, R_tile, last) blocks; channel axis is an
        # untiled leading dim, so per-channel planes are contiguous slabs.
        r = x_ref[:, 0]
        g = x_ref[:, 1]
        b = x_ref[:, 2]
        o_ref[:, 0] = (w00 * r + w01 * g + w02 * b).astype(o_ref.dtype)
        o_ref[:, 1] = (w10 * r + w11 * g + w12 * b).astype(o_ref.dtype)
        o_ref[:, 2] = (w20 * r + w21 * g + w22 * b).astype(o_ref.dtype)

    return kernel


def _ensure_two_steps(n, b_tile, rows, r_tile, sub):
    """v7x megacore: with grid=(1,1) one of the two TensorCores idles, so split
    the batch or row tiling to get >= 2 (parallel) grid steps when possible."""
    if pl.cdiv(n, b_tile) * pl.cdiv(rows, r_tile) >= 2:
        return b_tile, r_tile
    if b_tile > 1:
        return (b_tile + 1) // 2, r_tile
    if r_tile >= 2 * sub:
        return b_tile, _round_up((r_tile + 1) // 2, sub)
    return b_tile, r_tile  # too small to split; a single step is fine


def rgb_to_yuv420(x: jax.Array, weight=None) -> jax.Array:
    """x: (N, 3, H, W) -> (N, 3, H, W) per-pixel channel mix (the module's 1x1 conv)."""
    n, c, h, w = x.shape
    assert c == 3, "expected 3 input channels (RGB)"

    if weight is None:
        w_rows = _RGB_TO_YUV
    else:
        # Bake the fixed 3x3 conv weights as Python-float closure constants:
        # removes the SMEM operand and 9 scalar loads + scalar->vreg broadcasts
        # per grid step.
        # TODO(synk): if `weight` must stay a traced (trainable) array, pass it
        # as an SMEM operand instead of baking.
        w_np = np.asarray(jax.device_get(weight), dtype=np.float32).reshape(3, 3)
        w_rows = tuple(tuple(float(v) for v in row) for row in w_np)
    kernel = _make_mix_kernel(w_rows)

    itemsize = jnp.dtype(x.dtype).itemsize
    sub = _sublane_mult(x.dtype)
    hw = h * w

    if hw % _LANES == 0:
        # Lane-dense fast path: each channel plane is a (rows, 128) slab.
        rows, last = hw // _LANES, _LANES
        x_view = x.reshape(n, 3, rows, last)
    else:
        # Ragged path: block last dim = full W (divisibility exemption).  Only the
        # boundary blocks pay masked partial stores; no extra pad/slice HBM passes.
        rows, last = h, w
        x_view = x

    bytes_per_row = 3 * _round_up(last, _LANES) * itemsize          # lane-padded
    max_rows = max(sub, (_TARGET_BLOCK_BYTES // bytes_per_row) // sub * sub)
    if rows <= max_rows:
        # Whole image in one block: batch several images per grid step to amortize
        # the ~0.35 us/step overhead.  Footprint uses the sublane-PADDED row count.
        r_tile = rows
        img_bytes = _round_up(rows, sub) * bytes_per_row
        b_tile = int(max(1, min(n, _TARGET_BLOCK_BYTES // img_bytes)))
    else:
        r_tile = max_rows                                           # multiple of sub
        b_tile = 1
    b_tile, r_tile = _ensure_two_steps(n, b_tile, rows, r_tile, sub)

    grid = (pl.cdiv(n, b_tile), pl.cdiv(rows, r_tile))
    block = (b_tile, 3, r_tile, last)
    idx = lambda i, j: (i, 0, j, 0)

    # Explicit scoped-VMEM limit with headroom over the true (padded) residency.
    block_bytes = (b_tile * 3 * _round_up(r_tile, sub)
                   * _round_up(last, _LANES) * itemsize)
    vmem_limit = max(_VMEM_LIMIT_BYTES, 4 * block_bytes + (4 << 20))

    out = pl.pallas_call(
        kernel,
        out_shape=jax.ShapeDtypeStruct(x_view.shape, x.dtype),
        grid=grid,
        in_specs=[pl.BlockSpec(block, idx)],
        out_specs=pl.BlockSpec(block, idx),
        compiler_params=pltpu.CompilerParams(
            dimension_semantics=("parallel", "parallel"),
            vmem_limit_bytes=vmem_limit,
        ),
    )(x_view)
    return out.reshape(n, 3, h, w)


def make_rgb_to_yuv_weight() -> jax.Array:
    # Exactly the module's __init__ values, in conv2d weight layout (out, in, 1, 1).
    return jnp.array(_RGB_TO_YUV, dtype=jnp.float32).reshape(3, 3, 1, 1)


if __name__ == "__main__":
    key = jax.random.PRNGKey(0)
    weight = make_rgb_to_yuv_weight()
    w2d = weight.reshape(3, 3)

    # Test 1: lane-aligned fast path (H*W multiple of 128), forward-shaped input.
    # Test 2: ragged path (H*W not a multiple of 128) + partial batch block (n=3, b_tile=2).
    for i, shape in enumerate(((2, 3, 16, 16), (3, 3, 17, 19))):
        x = jax.random.uniform(jax.random.fold_in(key, i), shape, dtype=jnp.float32)
        out = jax.block_until_ready(rgb_to_yuv420(x, weight))
        ref = jnp.einsum("oc,nchw->nohw", w2d, x)
        assert out.shape == shape
        assert jnp.allclose(out, ref, atol=1e-5, rtol=1e-5)

    print("KERNEL_OK")
</pallas_src>

<mosaic_0001>
module attributes {stable_mosaic.version = 11 : i64} {
  func.func @kernel(%arg0: i32, %arg1: i32, %arg2: memref<1x3x2x128xf32, #tpu.memory_space<vmem>>, %arg3: memref<1x3x2x128xf32, #tpu.memory_space<vmem>>) attributes {dimension_semantics = [#tpu.dimension_semantics<parallel>, #tpu.dimension_semantics<parallel>], iteration_bounds = array<i64: 2, 1>, scalar_prefetch = 0 : i64, scratch_operands = 0 : i64, tpu.core_type = #tpu.core_type<tc>, window_params = [{transform_indices = @transform_0, window_bounds = array<i64: 1, 3, 2, 128>}, {transform_indices = @transform_1, window_bounds = array<i64: 1, 3, 2, 128>}]} {
    %c0 = arith.constant 0 : index
    %c0_0 = arith.constant 0 : index
    %c0_1 = arith.constant 0 : index
    %c0_2 = arith.constant 0 : index
    %0 = vector.load %arg2[%c0, %c0_0, %c0_1, %c0_2] : memref<1x3x2x128xf32, #tpu.memory_space<vmem>>, vector<1x1x2x128xf32>
    %1 = vector.shape_cast %0 : vector<1x1x2x128xf32> to vector<1x2x128xf32>
    %c0_3 = arith.constant 0 : index
    %c1 = arith.constant 1 : index
    %c0_4 = arith.constant 0 : index
    %c0_5 = arith.constant 0 : index
    %2 = vector.load %arg2[%c0_3, %c1, %c0_4, %c0_5] : memref<1x3x2x128xf32, #tpu.memory_space<vmem>>, vector<1x1x2x128xf32>
    %3 = vector.shape_cast %2 : vector<1x1x2x128xf32> to vector<1x2x128xf32>
    %c0_6 = arith.constant 0 : index
    %c2 = arith.constant 2 : index
    %c0_7 = arith.constant 0 : index
    %c0_8 = arith.constant 0 : index
    %4 = vector.load %arg2[%c0_6, %c2, %c0_7, %c0_8] : memref<1x3x2x128xf32, #tpu.memory_space<vmem>>, vector<1x1x2x128xf32>
    %5 = vector.shape_cast %4 : vector<1x1x2x128xf32> to vector<1x2x128xf32>
    %cst = arith.constant 2.990000e-01 : f32
    %6 = vector.broadcast %cst : f32 to vector<1x2x128xf32>
    %7 = arith.mulf %6, %1 : vector<1x2x128xf32>
    %cst_9 = arith.constant 5.870000e-01 : f32
    %8 = vector.broadcast %cst_9 : f32 to vector<1x2x128xf32>
    %9 = arith.mulf %8, %3 : vector<1x2x128xf32>
    %10 = arith.addf %7, %9 : vector<1x2x128xf32>
    %cst_10 = arith.constant 1.140000e-01 : f32
    %11 = vector.broadcast %cst_10 : f32 to vector<1x2x128xf32>
    %12 = arith.mulf %11, %5 : vector<1x2x128xf32>
    %13 = arith.addf %10, %12 : vector<1x2x128xf32>
    %c0_11 = arith.constant 0 : index
    %c0_12 = arith.constant 0 : index
    %c0_13 = arith.constant 0 : index
    %c0_14 = arith.constant 0 : index
    %14 = vector.load %arg3[%c0_11, %c0_12, %c0_13, %c0_14] : memref<1x3x2x128xf32, #tpu.memory_space<vmem>>, vector<1x1x2x128xf32>
    %15 = vector.shape_cast %14 : vector<1x1x2x128xf32> to vector<1x2x128xf32>
    %16 = vector.shape_cast %13 : vector<1x2x128xf32> to vector<1x1x2x128xf32>
    tpu.vector_store %arg3[%c0_11, %c0_12, %c0_13, %c0_14], %16 {strides = array<i32>} : memref<1x3x2x128xf32, #tpu.memory_space<vmem>>, vector<1x1x2x128xf32>,
    %cst_15 = arith.constant -1.470000e-01 : f32
    %17 = vector.broadcast %cst_15 : f32 to vector<1x2x128xf32>
    %18 = arith.mulf %17, %1 : vector<1x2x128xf32>
    %cst_16 = arith.constant 2.890000e-01 : f32
    %19 = vector.broadcast %cst_16 : f32 to vector<1x2x128xf32>
    %20 = arith.mulf %19, %3 : vector<1x2x128xf32>
    %21 = arith.addf %18, %20 : vector<1x2x128xf32>
    %cst_17 = arith.constant 4.360000e-01 : f32
    %22 = vector.broadcast %cst_17 : f32 to vector<1x2x128xf32>
    %23 = arith.mulf %22, %5 : vector<1x2x128xf32>
    %24 = arith.addf %21, %23 : vector<1x2x128xf32>
    %c0_18 = arith.constant 0 : index
    %c1_19 = arith.constant 1 : index
    %c0_20 = arith.constant 0 : index
    %c0_21 = arith.constant 0 : index
    %25 = vector.load %arg3[%c0_18, %c1_19, %c0_20, %c0_21] : memref<1x3x2x128xf32, #tpu.memory_space<vmem>>, vector<1x1x2x128xf32>
    %26 = vector.shape_cast %25 : vector<1x1x2x128xf32> to vector<1x2x128xf32>
    %27 = vector.shape_cast %24 : vector<1x2x128xf32> to vector<1x1x2x128xf32>
    tpu.vector_store %arg3[%c0_18, %c1_19, %c0_20, %c0_21], %27 {strides = array<i32>} : memref<1x3x2x128xf32, #tpu.memory_space<vmem>>, vector<1x1x2x128xf32>,
    %cst_22 = arith.constant 6.150000e-01 : f32
    %28 = vector.broadcast %cst_22 : f32 to vector<1x2x128xf32>
    %29 = arith.mulf %28, %1 : vector<1x2x128xf32>
    %cst_23 = arith.constant -5.150000e-01 : f32
    %30 = vector.broadcast %cst_23 : f32 to vector<1x2x128xf32>
    %31 = arith.mulf %30, %3 : vector<1x2x128xf32>
    %32 = arith.addf %29, %31 : vector<1x2x128xf32>
    %cst_24 = arith.constant -1.000000e-01 : f32
    %33 = vector.broadcast %cst_24 : f32 to vector<1x2x128xf32>
    %34 = arith.mulf %33, %5 : vector<1x2x128xf32>
    %35 = arith.addf %32, %34 : vector<1x2x128xf32>
    %c0_25 = arith.constant 0 : index
    %c2_26 = arith.constant 2 : index
    %c0_27 = arith.constant 0 : index
    %c0_28 = arith.constant 0 : index
    %36 = vector.load %arg3[%c0_25, %c2_26, %c0_27, %c0_28] : memref<1x3x2x128xf32, #tpu.memory_space<vmem>>, vector<1x1x2x128xf32>
    %37 = vector.shape_cast %36 : vector<1x1x2x128xf32> to vector<1x2x128xf32>
    %38 = vector.shape_cast %35 : vector<1x2x128xf32> to vector<1x1x2x128xf32>
    tpu.vector_store %arg3[%c0_25, %c2_26, %c0_27, %c0_28], %38 {strides = array<i32>} : memref<1x3x2x128xf32, #tpu.memory_space<vmem>>, vector<1x1x2x128xf32>,
    return
  }
  func.func @transform_0(%arg0: i32, %arg1: i32) -> (i32, i32, i32, i32) {
    %c0_i32 = arith.constant 0 : i32
    %c0_i32_0 = arith.constant 0 : i32
    %c0_i32_1 = arith.constant 0 : i32
    return %arg0, %c0_i32, %arg1, %c0_i32_0 : i32, i32, i32, i32
  }
  func.func @transform_1(%arg0: i32, %arg1: i32) -> (i32, i32, i32, i32) {
    %c0_i32 = arith.constant 0 : i32
    %c0_i32_0 = arith.constant 0 : i32
    %c0_i32_1 = arith.constant 0 : i32
    return %arg0, %c0_i32, %arg1, %c0_i32_0 : i32, i32, i32, i32
  }
}

</mosaic_0001>

<llo_original>
// kernel: tpu_custom_call.1
$region0: #{tpu_custom_call.1}
  #allocation0 [shape = 'u32[]', space=smem, size = 0x4, offset = 0x4, fixed_abs, tag = 'smem constant byte address 0x4 - core index']
  #allocation1 [shape = 'u32[144,128]{1,0:T(1,128)}', space=vmem, size = 0x12000, scoped, tag = 'internal scratch']
  %s0 = inlined_call_operand.hbm [shape: f32[2,3,2,128], index: 0, kind: input, shape index: {}]
  %s1 = inlined_call_operand.hbm [shape: f32[2,3,2,128], index: 1, kind: output, shape index: {}]
  %s2 = sld [smem:[#allocation0]]
  $region41: #{tpu_custom_call.1} parent=0
    _
  %s4 = ssub.s32 1, %s2
  %s5 = scalar_select 0, %s4, %s2
  $region1: #{tpu_custom_call.1} parent=0
    #allocation2 [shape = 'u8[6144]{0}', space=vmem, size = 0x1800, scoped, tag = 'input window, operand 0']
    #allocation3 [shape = 's32[2]{0}', space=sflag, size = 0x8, scoped, tag = 'scoped memory for tpu_custom_call.1']
    #allocation4 [shape = 's32[2]{0}', space=sflag, size = 0x8, scoped, tag = 'scoped memory for tpu_custom_call.1']
    #allocation5 [shape = 'u8[6144]{0}', space=vmem, size = 0x1800, scoped, tag = 'output window, operand 0']
    %6 = vsyncpa [#allocation3], 0
    %s7 = scalar_lea.sflag [#allocation3], 1
    %8 = vsyncpa %s7, 0
    %9 = vsyncpa [#allocation4], 0
    %s10 = scalar_lea.sflag [#allocation4], 1
    %11 = vsyncpa %s10, 0
    loop: start=0, step=1, limit=4
    $region2: #{tpu_custom_call.1} parent=1 // loop_pre_header
      _
    $region3: #{tpu_custom_call.1} parent=1 // loop_header
      %s13 = sphi 0, %s17
      %p14 = scmp.ge.s32.totalorder %s13, 4
      %s20 = sphi 0, %s32
      %s21 = sphi 0, %s28
      %s22 = sphi 0, %s20
      %s23 = sphi 0, %s21
      %s24 = sphi 0, %s22
      %s25 = sphi 0, %s23
      %s37 = sphi 0, %s39
      %s40 = sphi 0, %s37
      %s41 = sphi 0, %s40
      %s57 = sphi 0, %s41
      %s65 = sphi 0, %s67
      %s68 = sphi 0, %s65
      %s69 = sphi 0, %s68
      %s85 = sphi 0, %s69
    $region4: #{tpu_custom_call.1} parent=1 // loop_header_branch
      %16 = sbr.rel (%p14) target = $region8
    $region5: #{tpu_custom_call.1} parent=1 // loop_body
      %s18 = ssub.s32 %s13, 1
      %s19 = ssub.s32 %s13, 2
      %s26 = sadd.s32 1, %s21
      %p27 = scmp.ge.s32.totalorder %s26, 1
      %s28 = scalar_select %p27, 0, %s26
      %s29 = sadd.s32 1, %s20
      %s30 = scalar_select %p27, %s29, %s20
      %p31 = scmp.ge.s32.totalorder %s30, 2
      %s32 = scalar_select %p31, 0, %s30
      %s33 = ssub.s32 %s20, %s32
      %s34 = ssub.s32 %s21, %s28
      %s35 = sor.u32 %s33, %s34
      %p36 = scmp.eq.s32.totalorder %s35, 0
      %s38 = sadd.s32 %s37, 1
      %s39 = scalar_select %p36, %s37, %s38
      %p42 = pneg %p36
      %p43 = scmp.eq.s32.totalorder %s13, 1
      %p44 = por %p42, %p43
      %p45 = scmp.ne.s32.totalorder %s37, %s40
      %p46 = scmp.eq.s32.totalorder %s13, 0
      %p47 = por %p45, %p46
      %p48 = scmp.ne.s32.totalorder %s37, %s40
      %p49 = scmp.eq.s32.totalorder %s18, 1
      %p50 = por %p48, %p49
      %p51 = scmp.ne.s32.totalorder %s40, %s41
      %p52 = scmp.eq.s32.totalorder %s18, 0
      %p53 = por %p51, %p52
      %p54 = scmp.ne.s32.totalorder %s40, %s41
      %p55 = scmp.eq.s32.totalorder %s19, 1
      %p56 = por %p54, %p55
      %p58 = scmp.ne.s32.totalorder %s41, %s57
      %p59 = scmp.eq.s32.totalorder %s19, 0
      %p60 = por %p58, %p59
      %s61 = ssub.s32 %s20, %s32
      %s62 = ssub.s32 %s21, %s28
      %s63 = sor.u32 %s61, %s62
      %p64 = scmp.eq.s32.totalorder %s63, 0
      %s66 = sadd.s32 %s65, 1
      %s67 = scalar_select %p64, %s65, %s66
      %p70 = pneg %p64
      %p71 = scmp.eq.s32.totalorder %s13, 1
      %p72 = por %p70, %p71
      %p73 = scmp.ne.s32.totalorder %s65, %s68
      %p74 = scmp.eq.s32.totalorder %s13, 0
      %p75 = por %p73, %p74
      %p76 = scmp.ne.s32.totalorder %s65, %s68
      %p77 = scmp.eq.s32.totalorder %s18, 1
      %p78 = por %p76, %p77
      %p79 = scmp.ne.s32.totalorder %s68, %s69
      %p80 = scmp.eq.s32.totalorder %s18, 0
      %p81 = por %p79, %p80
      %p82 = scmp.ne.s32.totalorder %s68, %s69
      %p83 = scmp.eq.s32.totalorder %s19, 1
      %p84 = por %p82, %p83
      %p86 = scmp.ne.s32.totalorder %s69, %s85
      %p87 = scmp.eq.s32.totalorder %s19, 0
      %p88 = por %p86, %p87
      %p89 = scmp.le.s32.totalorder 1, %s13
      %p90 = scmp.lt.s32.totalorder %s13, 3
      %p91 = pnand %p89, %p90
      %p92 = pneg %p91
      // Predicated region
      $region9: #{tpu_custom_call.1} parent=5 // pred_check
        _
      $region10: #{tpu_custom_call.1} parent=5 // pred_check_branch
        %94 = sbr.rel (%p91) target = $region12
      $region11: #{tpu_custom_call.1} parent=5 // pred_region
        %s95 = ssub.s32 %s13, 1
      $region12: #{tpu_custom_call.1} parent=5 // pred_fallthru
        _
      %p96 = scmp.lt.s32.totalorder %s13, 2
      // Predicated region
      $region13: #{tpu_custom_call.1} parent=5 // pred_check
        %p97 = pneg %p96
      $region14: #{tpu_custom_call.1} parent=5 // pred_check_branch
        %99 = sbr.rel (%p97) target = $region16
      $region15: #{tpu_custom_call.1} parent=5 // pred_region
        // Predicated region
        $region17: #{tpu_custom_call.1} parent=15 // pred_check
          %p100 = pneg %p47
        $region18: #{tpu_custom_call.1} parent=15 // pred_check_branch
          %102 = sbr.rel (%p100) target = $region20
        $region19: #{tpu_custom_call.1} parent=15 // pred_region
          %s103 = sand.u32 %s37, 1
          %s104 = scalar_lea.sflag [#allocation3], %s103
          %s105 = sand.u32 %s37, 1
          %s106 = smul.addr %s105, 6
          %s107 = scalar_lea.vmem [#allocation2], %s106
          %s109 = ssub.s32 96, 96
          %110 = vsyncadd %s104, %s109
          %s111 = smul.addr %s20, 3
          %s112 = sadd.s32 %s21, %s111
          %s113 = smul.addr %s112, 32
          %s114 = scalar_lea.hbm %s0, %s113
          %s115 = sshll.u32 %s107, 4
          %s116 = int_to_ptr.vmem [resolvable:$true] %s115
          %121 = dma.hbm_to_vmem [thread:$0]  %s114, 96, %s116, %s104, 32, 32, 2
        $region20: #{tpu_custom_call.1} parent=15 // pred_fallthru
          _
      $region16: #{tpu_custom_call.1} parent=5 // pred_fallthru
        _
      %p122 = scmp.le.s32.totalorder 1, %s13
      %p123 = scmp.lt.s32.totalorder %s13, 3
      %p124 = pnand %p122, %p123
      %p125 = pneg %p124
      // Predicated region
      $region21: #{tpu_custom_call.1} parent=5 // pred_check
        _
      $region22: #{tpu_custom_call.1} parent=5 // pred_check_branch
        %127 = sbr.rel (%p124) target = $region24
      $region23: #{tpu_custom_call.1} parent=5 // pred_region
        %s128 = ssub.s32 %s13, 1
        %s129 = sand.u32 %s40, 1
        %s130 = scalar_lea.sflag [#allocation3], %s129
        %s131 = sand.u32 %s40, 1
        %s132 = smul.addr %s131, 6
        %s133 = scalar_lea.vmem [#allocation2], %s132
        // Predicated region
        $region25: #{tpu_custom_call.1} parent=23 // pred_check
          %p134 = pneg %p53
        $region26: #{tpu_custom_call.1} parent=23 // pred_check_branch
          %136 = sbr.rel (%p134) target = $region28
        $region27: #{tpu_custom_call.1} parent=23 // pred_region
          %137 = dma.done %s130, 96
        $region28: #{tpu_custom_call.1} parent=23 // pred_fallthru
          _
        %s138 = sand.u32 %s40, 1
        %s139 = scalar_lea.sflag [#allocation3], %s138
        %s140 = sand.u32 %s40, 1
        %s141 = smul.addr %s140, 6
        %s142 = scalar_lea.vmem [#allocation2], %s141
        %p143 = pneg %p53
        %p144 = pneg %p50
        %p145 = pneg %p81
        %p146 = pneg %p78
        %s147 = sand.u32 %s68, 1
        %s148 = scalar_lea.sflag [#allocation4], %s147
        %s149 = sand.u32 %s68, 1
        %s150 = smul.addr %s149, 6
        %s151 = scalar_lea.vmem [#allocation5], %s150
        %v152 = vld [vmem:[%s133] sm:$0x3]
        %s153 = scalar_lea.vmem %s133, 2 [#allocation2]
        %v154 = vld [vmem:[%s153] sm:$0x3]
        %s155 = scalar_lea.vmem %s133, 4 [#allocation2]
        %v156 = vld [vmem:[%s155] sm:$0x3]
        %v157 = vmul.f32 %v152, 0.299
        %v158 = vmul.f32 %v154, 0.587
        %v159 = vadd.f32 %v157, %v158
        %v160 = vmul.f32 %v156, 0.114
        %v161 = vadd.f32 %v159, %v160
        %162 = vst [vmem:[%s151] sm:$0x3] %v161
        %v163 = vmul.f32 %v152, -0.147
        %v164 = vmul.f32 %v154, 0.289
        %v165 = vadd.f32 %v163, %v164
        %v166 = vmul.f32 %v156, 0.436
        %v167 = vadd.f32 %v165, %v166
        %s168 = scalar_lea.vmem %s151, 2 [#allocation5]
        %169 = vst [vmem:[%s168] sm:$0x3] %v167
        %v170 = vmul.f32 %v152, 0.615
        %v171 = vmul.f32 %v154, -0.515
        %v172 = vadd.f32 %v170, %v171
        %v173 = vmul.f32 %v156, -0.1
        %v174 = vadd.f32 %v172, %v173
        %s175 = scalar_lea.vmem %s151, 4 [#allocation5]
        %176 = vst [vmem:[%s175] sm:$0x3] %v174
        %s177 = sand.u32 %s68, 1
        %s178 = scalar_lea.sflag [#allocation4], %s177
        %s179 = sand.u32 %s68, 1
        %s180 = smul.addr %s179, 6
        %s181 = scalar_lea.vmem [#allocation5], %s180
        // Predicated region
        $region29: #{tpu_custom_call.1} parent=23 // pred_check
          %p182 = pneg %p78
        $region30: #{tpu_custom_call.1} parent=23 // pred_check_branch
          %184 = sbr.rel (%p182) target = $region32
        $region31: #{tpu_custom_call.1} parent=23 // pred_region
          %s186 = ssub.s32 96, 96
          %187 = vsyncadd %s178, %s186
          %s188 = smul.addr %s22, 3
          %s189 = sadd.s32 %s23, %s188
          %s190 = smul.addr %s189, 32
          %s191 = scalar_lea.hbm %s1, %s190
          %s192 = sshll.u32 %s181, 4
          %s193 = int_to_ptr.vmem [resolvable:$true] %s192
          %198 = dma.vmem_to_hbm [thread:$0]  %s193, 96, %s191, %s178, 32, 32, 2
        $region32: #{tpu_custom_call.1} parent=23 // pred_fallthru
          _
      $region24: #{tpu_custom_call.1} parent=5 // pred_fallthru
        _
      %p199 = scmp.le.s32.totalorder 2, %s13
      // Predicated region
      $region33: #{tpu_custom_call.1} parent=5 // pred_check
        %p200 = pneg %p199
      $region34: #{tpu_custom_call.1} parent=5 // pred_check_branch
        %202 = sbr.rel (%p200) target = $region36
      $region35: #{tpu_custom_call.1} parent=5 // pred_region
        %s203 = ssub.s32 %s13, 2
        // Predicated region
        $region37: #{tpu_custom_call.1} parent=35 // pred_check
          %p204 = pneg %p84
        $region38: #{tpu_custom_call.1} parent=35 // pred_check_branch
          %206 = sbr.rel (%p204) target = $region40
        $region39: #{tpu_custom_call.1} parent=35 // pred_region
          %s207 = sand.u32 %s69, 1
          %s208 = scalar_lea.sflag [#allocation4], %s207
          %s209 = sand.u32 %s69, 1
          %s210 = smul.addr %s209, 6
          %s211 = scalar_lea.vmem [#allocation5], %s210
          %212 = dma.done %s208, 96
        $region40: #{tpu_custom_call.1} parent=35 // pred_fallthru
          _
      $region36: #{tpu_custom_call.1} parent=5 // pred_fallthru
        _
    $region6: #{tpu_custom_call.1} parent=1 // loop_footer
      %s17 = sadd.s32 1, %s13
    $region7: #{tpu_custom_call.1} parent=1 // loop_footer_branch
      %12 = sbr.rel target = $region3
    $region8: #{tpu_custom_call.1} parent=1 // loop_exit
      _
    %213 = vsyncpa [#allocation3], 1
    %s214 = scalar_lea.sflag [#allocation3], 1
    %215 = vsyncpa %s214, 1
    %216 = vsyncpa [#allocation4], 1
    %s217 = scalar_lea.sflag [#allocation4], 1
    %218 = vsyncpa %s217, 1

</llo_original>
